<compile_context>
chip_gen: v5e
topology: v5e:2x2
jax: 0.10.0
libtpu: 0.0.40
codegen_flags: <defaults>
</compile_context>

<pallas_src>
import math
import jax
import jax.numpy as jnp
from jax import lax
from jax.experimental import pallas as pl
from jax.experimental.pallas import tpu as pltpu


# ----------------------------------------------------------------------------
# Position-encoding helpers (buffer construction == __init__ time, plain JAX)
# ----------------------------------------------------------------------------
def _generate_positions_for_encoding(spatial_shape, v_min=-1.0, v_max=1.0):
    coords = [jnp.linspace(v_min, v_max, s, dtype=jnp.float32) for s in spatial_shape]
    grids = jnp.meshgrid(*coords, indexing="ij")
    return jnp.stack(grids, axis=len(spatial_shape))            # (*shape, ndim)


def _generate_position_encodings(p, num_frequency_bands, max_frequencies=None,
                                 include_positions=True):
    if max_frequencies is None:
        max_frequencies = p.shape[:-1]
    frequencies = [jnp.linspace(1.0, mf / 2.0, num_frequency_bands, dtype=jnp.float32)
                   for mf in max_frequencies]
    frequency_grids = [p[..., i:i + 1] * f[None, ...] for i, f in enumerate(frequencies)]
    encodings = []
    if include_positions:
        encodings.append(p)
    encodings.extend([jnp.sin(math.pi * g) for g in frequency_grids])
    encodings.extend([jnp.cos(math.pi * g) for g in frequency_grids])
    return jnp.concatenate(encodings, axis=-1)


# ----------------------------------------------------------------------------
# Pallas kernel: fused (channels-first tokens)^T @ W_pad + [bias | pos_enc]
# ----------------------------------------------------------------------------
def _image_ia_kernel(x_ref, w_ref, base_ref, o_ref):
    # x_ref   : (1, Cin, tS)  channels-first token block (NCHW spatially flat)
    # w_ref   : (Cin, Ctot)   zero-padded 1x1-conv weight  [W | 0]
    # base_ref: (tS, Ctot)    additive base [bias bcast | fourier pos-enc]
    # o_ref   : (1, tS, Ctot)
    x = x_ref[0]                                               # (Cin, tS)
    # Contract over Cin (dim 0 of both) -> (tS, Ctot); transposed-LHS matmul
    # keeps the channels-last transpose inside the kernel (XLU/MXU), no extra
    # HBM round trip for a standalone XLA transpose.
    y = lax.dot_general(
        x, w_ref[...],
        dimension_numbers=(((0,), (0,)), ((), ())),
        preferred_element_type=jnp.float32)                    # (tS, Ctot)
    o_ref[0] = (y + base_ref[...]).astype(o_ref.dtype)


def _pick_tile_s(S):
    """Largest 128-multiple divisor of S up to 1024, else the full S."""
    if S % 128 == 0:
        for cand in (1024, 512, 256, 128):
            if S % cand == 0 and cand <= S:
                return cand
    return S


def image_ia_pallas(x_cf, w_pad, base, out_dtype=jnp.float32, tile_s=None):
    """x_cf: (B, Cin, S) f32, w_pad: (Cin, Ctot), base: (S, Ctot) -> (B, S, Ctot)."""
    B, Cin, S = x_cf.shape
    Ctot = w_pad.shape[1]
    if tile_s is None:
        tile_s = _pick_tile_s(S)
    n_s = S // tile_s

    # NOTE(v7x): w_pad / base are grid-constant along the batch axis; they are
    # small here so the default double-buffering is an acceptable VMEM cost.
    return pl.pallas_call(
        _image_ia_kernel,
        out_shape=jax.ShapeDtypeStruct((B, S, Ctot), out_dtype),
        grid_spec=pltpu.PrefetchScalarGridSpec(
            num_scalar_prefetch=0,
            grid=(B, n_s),
            in_specs=[
                pl.BlockSpec((1, Cin, tile_s), lambda b, j: (b, 0, j)),
                pl.BlockSpec((Cin, Ctot), lambda b, j: (0, 0)),
                pl.BlockSpec((tile_s, Ctot), lambda b, j: (j, 0)),
            ],
            out_specs=pl.BlockSpec((1, tile_s, Ctot), lambda b, j: (b, j, 0)),
        ),
        compiler_params=pltpu.CompilerParams(
            dimension_semantics=("parallel", "parallel")),
    )(x_cf, w_pad, base)


# ----------------------------------------------------------------------------
# ImageIA module equivalent
# ----------------------------------------------------------------------------
class ImageIAPallas:
    def __init__(self, image_shape, num_frequency_bands, max_frequency=None,
                 patchify=1, conv_1x1=None, in_channels=3, key=None,
                 out_dtype=jnp.float32):
        num_image_channels, *self.spatial_shape = image_shape
        self.image_shape = tuple(image_shape)
        self.num_frequency_bands = num_frequency_bands
        self.patch_size = patchify
        self.out_dtype = out_dtype  # set to jnp.bfloat16 if downstream allows
        if patchify > 1:
            self.spatial_shape = [s // self.patch_size for s in self.spatial_shape]
        if conv_1x1 is not None:
            num_image_channels = conv_1x1

        n_pe = len(self.spatial_shape) * (2 * num_frequency_bands + 1)
        self.num_input_channels = num_image_channels + n_pe

        # Fourier position encodings, flattened to (S, Cpe)
        pos = _generate_positions_for_encoding(self.spatial_shape)
        mf = None if max_frequency is None else [max_frequency] * len(self.spatial_shape)
        enc = _generate_position_encodings(pos, num_frequency_bands, mf)
        self.position_encoding = enc.reshape(-1, enc.shape[-1])          # (S, Cpe)
        S = self.position_encoding.shape[0]
        Cpe = self.position_encoding.shape[1]

        # 1x1 conv params (deterministic init, same shapes as nn.Conv2d(in, out, 1))
        self.conv_w = None
        self.conv_b = None
        self.conv_w_pad = None
        self.base = None
        if conv_1x1 is not None:
            if patchify > 1:
                in_channels *= patchify ** 2
            key = jax.random.PRNGKey(0) if key is None else key
            kw, kb = jax.random.split(key)
            bound = 1.0 / math.sqrt(in_channels)
            # stored as (Cin, Cout) so the kernel matmul is tokens @ W
            self.conv_w = jax.random.uniform(kw, (in_channels, conv_1x1),
                                             jnp.float32, -bound, bound)
            self.conv_b = jax.random.uniform(kb, (conv_1x1,),
                                             jnp.float32, -bound, bound)
            # Precompute fused operands: zero-padded weight + additive base.
            self.conv_w_pad = jnp.concatenate(
                [self.conv_w, jnp.zeros((in_channels, Cpe), jnp.float32)], axis=-1)
            self.base = jnp.concatenate(
                [jnp.broadcast_to(self.conv_b[None, :], (S, conv_1x1)),
                 self.position_encoding], axis=-1)                       # (S, Ctot)

    def __call__(self, x):
        # x: (b, C, H, W) NCHW float32
        b, *d = x.shape
        if tuple(d) != self.image_shape:
            raise ValueError(
                f"Input image shape {tuple(d)} different from required shape {self.image_shape}")

        if self.patch_size > 1:
            C, H, W = self.image_shape
            p = self.patch_size
            h, w = H // p, W // p
            # 'b c (h dh) (w dw) -> b (dh dw c) h w'   (kept as an XLA transpose)
            x = x.reshape(b, C, h, p, w, p)
            x = jnp.transpose(x, (0, 3, 5, 1, 2, 4))                     # (b, dh, dw, c, h, w)
            x = x.reshape(b, p * p * C, h, w)

        Bc, Cin, Hc, Wc = x.shape
        # Free (contiguous) reshape — channels-last transpose happens in-kernel.
        x_cf = x.reshape(Bc, Cin, Hc * Wc)                               # (B, Cin, S)

        if self.conv_w_pad is not None:
            return image_ia_pallas(x_cf, self.conv_w_pad, self.base,
                                   out_dtype=self.out_dtype)

        # No-conv path: a pure copy + concat — identity matmul through the MXU
        # kernel would only waste work, so this stays as plain XLA.
        tokens = jnp.transpose(x_cf, (0, 2, 1))                          # (B, S, Cin)
        pe = jnp.broadcast_to(self.position_encoding[None],
                              (Bc,) + self.position_encoding.shape)
        return jnp.concatenate([tokens, pe], axis=-1).astype(self.out_dtype)


# ----------------------------------------------------------------------------
if __name__ == "__main__":
    # Small config: image_shape=(4, 16, 16), patchify=2, conv_1x1=32, 8 freq bands
    B = 2
    image_shape = (4, 16, 16)
    adapter = ImageIAPallas(image_shape, num_frequency_bands=8,
                            max_frequency=None, patchify=2, conv_1x1=32,
                            in_channels=4, key=jax.random.PRNGKey(0))

    x = jax.random.normal(jax.random.PRNGKey(0), (B,) + image_shape, jnp.float32)

    out = adapter(x)
    out = jax.block_until_ready(out)

    # Pure-JAX reference for sanity
    C, H, W = image_shape
    p = adapter.patch_size
    h, w = H // p, W // p
    xr = x.reshape(B, C, h, p, w, p)
    xr = jnp.transpose(xr, (0, 3, 5, 1, 2, 4)).reshape(B, p * p * C, h, w)
    toks = jnp.transpose(xr, (0, 2, 3, 1)).reshape(B, h * w, p * p * C)
    y_ref = toks @ adapter.conv_w + adapter.conv_b
    pe_ref = jnp.broadcast_to(adapter.position_encoding[None],
                              (B,) + adapter.position_encoding.shape)
    ref = jnp.concatenate([y_ref, pe_ref], axis=-1)

    assert out.shape == (B, h * w, 32 + 2 * (2 * 8 + 1)), out.shape
    assert jnp.allclose(out, ref, atol=1e-4, rtol=1e-4)
    print("KERNEL_OK")
</pallas_src>

<mosaic_0001>
module attributes {stable_mosaic.version = 11 : i64} {
  func.func @_image_ia_kernel(%arg0: i32, %arg1: i32, %arg2: memref<1x16x64xf32, #tpu.memory_space<vmem>>, %arg3: memref<16x66xf32, #tpu.memory_space<vmem>>, %arg4: memref<64x66xf32, #tpu.memory_space<vmem>>, %arg5: memref<1x64x66xf32, #tpu.memory_space<vmem>>) attributes {dimension_semantics = [#tpu.dimension_semantics<parallel>, #tpu.dimension_semantics<parallel>], iteration_bounds = array<i64: 2, 1>, scalar_prefetch = 0 : i64, scratch_operands = 0 : i64, tpu.core_type = #tpu.core_type<tc>, window_params = [{transform_indices = @transform_0, window_bounds = array<i64: 1, 16, 64>}, {pipeline_mode = #tpu.pipeline_mode<synchronous>, transform_indices = @transform_1, window_bounds = array<i64: 16, 66>}, {transform_indices = @transform_2, window_bounds = array<i64: 64, 66>}, {transform_indices = @transform_3, window_bounds = array<i64: 1, 64, 66>}]} {
    %c0 = arith.constant 0 : index
    %c0_0 = arith.constant 0 : index
    %c0_1 = arith.constant 0 : index
    %0 = vector.load %arg2[%c0, %c0_0, %c0_1] : memref<1x16x64xf32, #tpu.memory_space<vmem>>, vector<1x16x64xf32>
    %1 = vector.shape_cast %0 : vector<1x16x64xf32> to vector<16x64xf32>
    %c0_2 = arith.constant 0 : index
    %c0_3 = arith.constant 0 : index
    %2 = vector.load %arg3[%c0_2, %c0_3] : memref<16x66xf32, #tpu.memory_space<vmem>>, vector<16x66xf32>
    %cst = arith.constant dense<0.000000e+00> : vector<64x66xf32>
    %3 = tpu.matmul %1, %2, %cst {dimension_numbers = #tpu.dot_dimension_numbers<[0], [0], [1], [1], [0, 1, 1, 1], [], []>} : vector<16x64xf32>, vector<16x66xf32>, vector<64x66xf32> -> vector<64x66xf32>
    %c0_4 = arith.constant 0 : index
    %c0_5 = arith.constant 0 : index
    %4 = vector.load %arg4[%c0_4, %c0_5] : memref<64x66xf32, #tpu.memory_space<vmem>>, vector<64x66xf32>
    %5 = arith.addf %3, %4 : vector<64x66xf32>
    %c0_6 = arith.constant 0 : index
    %c0_7 = arith.constant 0 : index
    %c0_8 = arith.constant 0 : index
    %6 = vector.load %arg5[%c0_6, %c0_7, %c0_8] : memref<1x64x66xf32, #tpu.memory_space<vmem>>, vector<1x64x66xf32>
    %7 = vector.shape_cast %6 : vector<1x64x66xf32> to vector<64x66xf32>
    %8 = vector.shape_cast %5 : vector<64x66xf32> to vector<1x64x66xf32>
    tpu.vector_store %arg5[%c0_6, %c0_7, %c0_8], %8 {strides = array<i32>} : memref<1x64x66xf32, #tpu.memory_space<vmem>>, vector<1x64x66xf32>,
    return
  }
  func.func @transform_0(%arg0: i32, %arg1: i32) -> (i32, i32, i32) {
    %c0_i32 = arith.constant 0 : i32
    %c0_i32_0 = arith.constant 0 : i32
    return %arg0, %c0_i32, %arg1 : i32, i32, i32
  }
  func.func @transform_1(%arg0: i32, %arg1: i32) -> (i32, i32) {
    %c0_i32 = arith.constant 0 : i32
    %c0_i32_0 = arith.constant 0 : i32
    %c0_i32_1 = arith.constant 0 : i32
    return %c0_i32, %c0_i32_0 : i32, i32
  }
  func.func @transform_2(%arg0: i32, %arg1: i32) -> (i32, i32) {
    %c0_i32 = arith.constant 0 : i32
    %c0_i32_0 = arith.constant 0 : i32
    return %arg1, %c0_i32 : i32, i32
  }
  func.func @transform_3(%arg0: i32, %arg1: i32) -> (i32, i32, i32) {
    %c0_i32 = arith.constant 0 : i32
    %c0_i32_0 = arith.constant 0 : i32
    return %arg0, %arg1, %c0_i32 : i32, i32, i32
  }
}

</mosaic_0001>

<llo_original>
// kernel: tpu_custom_call.1
$region0: #{tpu_custom_call.1}
  #allocation0 [shape = 'u32[]', space=smem, size = 0x4, offset = 0x4, fixed_abs, tag = 'smem constant byte address 0x4 - core index']
  #allocation1 [shape = 'u32[72,128]{1,0:T(1,128)}', space=vmem, size = 0x9000, scoped, tag = 'internal scratch']
  %s0 = inlined_call_operand.hbm [shape: f32[2,16,64], index: 0, kind: input, shape index: {}]
  %s1 = inlined_call_operand.hbm [shape: f32[16,66], index: 1, kind: input, shape index: {}]
  %s2 = inlined_call_operand.hbm [shape: f32[64,66], index: 2, kind: input, shape index: {}]
  %s3 = inlined_call_operand.hbm [shape: f32[2,64,66], index: 3, kind: output, shape index: {}]
  %s4 = sld [smem:[#allocation0]]
  $region57: #{tpu_custom_call.1} parent=0
    _
  %s6 = ssub.s32 1, %s4
  %s7 = scalar_select 0, %s6, %s4
  $region1: #{tpu_custom_call.1} parent=0
    #allocation2 [shape = 'u8[16384]{0}', space=vmem, size = 0x4000, scoped, tag = 'input window, operand 0']
    #allocation3 [shape = 's32[2]{0}', space=sflag, size = 0x8, scoped, tag = 'scoped memory for tpu_custom_call.1']
    #allocation4 [shape = 's32[2]{0}', space=sflag, size = 0x8, scoped, tag = 'scoped memory for tpu_custom_call.1']
    #allocation5 [shape = 'u8[8192]{0}', space=vmem, size = 0x2000, scoped, tag = 'input window, operand 1, single buffered']
    #allocation6 [shape = 's32[1]{0}', space=sflag, size = 0x4, scoped, tag = 'scoped memory for tpu_custom_call.1']
    #allocation7 [shape = 'u8[32768]{0}', space=vmem, size = 0x8000, scoped, tag = 'input window, operand 2, single buffered']
    #allocation8 [shape = 'u8[65536]{0}', space=vmem, size = 0x10000, scoped, tag = 'output window, operand 0']
    %8 = vsyncpa [#allocation3], 0
    %s9 = scalar_lea.sflag [#allocation3], 1
    %10 = vsyncpa %s9, 0
    %11 = vsyncpa [#allocation6], 0
    %12 = vsyncpa [#allocation4], 0
    %s13 = scalar_lea.sflag [#allocation4], 1
    %14 = vsyncpa %s13, 0
    loop: start=0, step=1, limit=4
    $region2: #{tpu_custom_call.1} parent=1 // loop_pre_header
      _
    $region3: #{tpu_custom_call.1} parent=1 // loop_header
      %s16 = sphi 0, %s20
      %p17 = scmp.ge.s32.totalorder %s16, 4
      %s23 = sphi 0, %s35
      %s24 = sphi 0, %s31
      %s25 = sphi 0, %s23
      %s26 = sphi 0, %s24
      %s27 = sphi 0, %s25
      %s28 = sphi 0, %s26
      %s40 = sphi 0, %s42
      %s43 = sphi 0, %s40
      %s44 = sphi 0, %s43
      %s60 = sphi 0, %s44
      %s64 = sphi 0, %s64
      %s66 = sphi 0, %s64
      %s67 = sphi 0, %s66
      %s81 = sphi 0, %s67
      %s87 = sphi 0, %s89
      %s90 = sphi 0, %s87
      %s91 = sphi 0, %s90
      %s107 = sphi 0, %s91
      %s115 = sphi 0, %s117
      %s118 = sphi 0, %s115
      %s119 = sphi 0, %s118
      %s135 = sphi 0, %s119
    $region4: #{tpu_custom_call.1} parent=1 // loop_header_branch
      %19 = sbr.rel (%p17) target = $region8
    $region5: #{tpu_custom_call.1} parent=1 // loop_body
      %s21 = ssub.s32 %s16, 1
      %s22 = ssub.s32 %s16, 2
      %s29 = sadd.s32 1, %s24
      %p30 = scmp.ge.s32.totalorder %s29, 1
      %s31 = scalar_select %p30, 0, %s29
      %s32 = sadd.s32 1, %s23
      %s33 = scalar_select %p30, %s32, %s23
      %p34 = scmp.ge.s32.totalorder %s33, 2
      %s35 = scalar_select %p34, 0, %s33
      %s36 = ssub.s32 %s23, %s35
      %s37 = ssub.s32 %s24, %s31
      %s38 = sor.u32 %s36, %s37
      %p39 = scmp.eq.s32.totalorder %s38, 0
      %s41 = sadd.s32 %s40, 1
      %s42 = scalar_select %p39, %s40, %s41
      %p45 = pneg %p39
      %p46 = scmp.eq.s32.totalorder %s16, 1
      %p47 = por %p45, %p46
      %p48 = scmp.ne.s32.totalorder %s40, %s43
      %p49 = scmp.eq.s32.totalorder %s16, 0
      %p50 = por %p48, %p49
      %p51 = scmp.ne.s32.totalorder %s40, %s43
      %p52 = scmp.eq.s32.totalorder %s21, 1
      %p53 = por %p51, %p52
      %p54 = scmp.ne.s32.totalorder %s43, %s44
      %p55 = scmp.eq.s32.totalorder %s21, 0
      %p56 = por %p54, %p55
      %p57 = scmp.ne.s32.totalorder %s43, %s44
      %p58 = scmp.eq.s32.totalorder %s22, 1
      %p59 = por %p57, %p58
      %p61 = scmp.ne.s32.totalorder %s44, %s60
      %p62 = scmp.eq.s32.totalorder %s22, 0
      %p63 = por %p61, %p62
      %s65 = sadd.s32 %s64, 1
      %p68 = scmp.eq.s32.totalorder %s16, 1
      %p69 = scmp.ne.s32.totalorder %s64, %s66
      %p70 = scmp.eq.s32.totalorder %s16, 0
      %p71 = por %p69, %p70
      %p72 = scmp.ne.s32.totalorder %s64, %s66
      %p73 = scmp.eq.s32.totalorder %s21, 1
      %p74 = por %p72, %p73
      %p75 = scmp.ne.s32.totalorder %s66, %s67
      %p76 = scmp.eq.s32.totalorder %s21, 0
      %p77 = por %p75, %p76
      %p78 = scmp.ne.s32.totalorder %s66, %s67
      %p79 = scmp.eq.s32.totalorder %s22, 1
      %p80 = por %p78, %p79
      %p82 = scmp.ne.s32.totalorder %s67, %s81
      %p83 = scmp.eq.s32.totalorder %s22, 0
      %p84 = por %p82, %p83
      %s85 = ssub.s32 %s24, %s31
      %p86 = scmp.eq.s32.totalorder %s85, 0
      %s88 = sadd.s32 %s87, 1
      %s89 = scalar_select %p86, %s87, %s88
      %p92 = pneg %p86
      %p93 = scmp.eq.s32.totalorder %s16, 1
      %p94 = por %p92, %p93
      %p95 = scmp.ne.s32.totalorder %s87, %s90
      %p96 = scmp.eq.s32.totalorder %s16, 0
      %p97 = por %p95, %p96
      %p98 = scmp.ne.s32.totalorder %s87, %s90
      %p99 = scmp.eq.s32.totalorder %s21, 1
      %p100 = por %p98, %p99
      %p101 = scmp.ne.s32.totalorder %s90, %s91
      %p102 = scmp.eq.s32.totalorder %s21, 0
      %p103 = por %p101, %p102
      %p104 = scmp.ne.s32.totalorder %s90, %s91
      %p105 = scmp.eq.s32.totalorder %s22, 1
      %p106 = por %p104, %p105
      %p108 = scmp.ne.s32.totalorder %s91, %s107
      %p109 = scmp.eq.s32.totalorder %s22, 0
      %p110 = por %p108, %p109
      %s111 = ssub.s32 %s23, %s35
      %s112 = ssub.s32 %s24, %s31
      %s113 = sor.u32 %s111, %s112
      %p114 = scmp.eq.s32.totalorder %s113, 0
      %s116 = sadd.s32 %s115, 1
      %s117 = scalar_select %p114, %s115, %s116
      %p120 = pneg %p114
      %p121 = scmp.eq.s32.totalorder %s16, 1
      %p122 = por %p120, %p121
      %p123 = scmp.ne.s32.totalorder %s115, %s118
      %p124 = scmp.eq.s32.totalorder %s16, 0
      %p125 = por %p123, %p124
      %p126 = scmp.ne.s32.totalorder %s115, %s118
      %p127 = scmp.eq.s32.totalorder %s21, 1
      %p128 = por %p126, %p127
      %p129 = scmp.ne.s32.totalorder %s118, %s119
      %p130 = scmp.eq.s32.totalorder %s21, 0
      %p131 = por %p129, %p130
      %p132 = scmp.ne.s32.totalorder %s118, %s119
      %p133 = scmp.eq.s32.totalorder %s22, 1
      %p134 = por %p132, %p133
      %p136 = scmp.ne.s32.totalorder %s119, %s135
      %p137 = scmp.eq.s32.totalorder %s22, 0
      %p138 = por %p136, %p137
      %p139 = scmp.le.s32.totalorder 1, %s16
      %p140 = scmp.lt.s32.totalorder %s16, 3
      %p141 = pnand %p139, %p140
      %p142 = pneg %p141
      // Predicated region
      $region9: #{tpu_custom_call.1} parent=5 // pred_check
        _
      $region10: #{tpu_custom_call.1} parent=5 // pred_check_branch
        %144 = sbr.rel (%p141) target = $region12
      $region11: #{tpu_custom_call.1} parent=5 // pred_region
        %s145 = ssub.s32 %s16, 1
        // Predicated region
        $region13: #{tpu_custom_call.1} parent=11 // pred_check
          %p146 = pneg %p77
        $region14: #{tpu_custom_call.1} parent=11 // pred_check_branch
          %148 = sbr.rel (%p146) target = $region16
        $region15: #{tpu_custom_call.1} parent=11 // pred_region
          %150 = vsyncadd [#allocation6], 0
          %s151 = sshll.u32 %s1, 4
          %s152 = int_to_ptr.hbm [resolvable:$true] %s151
          %s153 = sshll.u32 [#allocation5], 4
          %s154 = int_to_ptr.vmem [resolvable:$true] %s153
          %159 = dma.hbm_to_vmem [thread:$0]  %s152, 256, %s154, [#allocation6], 128, 128, 8
        $region16: #{tpu_custom_call.1} parent=11 // pred_fallthru
          _
        // Predicated region
        $region17: #{tpu_custom_call.1} parent=11 // pred_check
          %p160 = pneg %p103
        $region18: #{tpu_custom_call.1} parent=11 // pred_check_branch
          %162 = sbr.rel (%p160) target = $region20
        $region19: #{tpu_custom_call.1} parent=11 // pred_region
          %s163 = smul.u32 8, %s26
          %165 = vsyncadd [#allocation6], 0
          %s166 = smul.addr %s163, 8
          %s167 = scalar_lea.hbm %s2, %s166
          %s168 = sshll.u32 %s167, 4
          %s169 = int_to_ptr.hbm [resolvable:$true] %s168
          %s170 = sshll.u32 [#allocation7], 4
          %s171 = int_to_ptr.vmem [resolvable:$true] %s170
          %176 = dma.hbm_to_vmem [thread:$0]  %s169, 1024, %s171, [#allocation6], 128, 128, 8
        $region20: #{tpu_custom_call.1} parent=11 // pred_fallthru
          _
      $region12: #{tpu_custom_call.1} parent=5 // pred_fallthru
        _
      %p177 = scmp.lt.s32.totalorder %s16, 2
      // Predicated region
      $region21: #{tpu_custom_call.1} parent=5 // pred_check
        %p178 = pneg %p177
      $region22: #{tpu_custom_call.1} parent=5 // pred_check_branch
        %180 = sbr.rel (%p178) target = $region24
      $region23: #{tpu_custom_call.1} parent=5 // pred_region
        // Predicated region
        $region25: #{tpu_custom_call.1} parent=23 // pred_check
          %p181 = pneg %p50
        $region26: #{tpu_custom_call.1} parent=23 // pred_check_branch
          %183 = sbr.rel (%p181) target = $region28
        $region27: #{tpu_custom_call.1} parent=23 // pred_region
          %s184 = sand.u32 %s40, 1
          %s185 = scalar_lea.sflag [#allocation3], %s184
          %s186 = sand.u32 %s40, 1
          %s187 = smul.addr %s186, 16
          %s188 = scalar_lea.vmem [#allocation2], %s187
          %190 = vsyncadd %s185, 0
          %s191 = smul.addr %s23, 2
          %s192 = sadd.s32 %s24, %s191
          %s193 = smul.addr %s192, 8
          %s194 = scalar_lea.hbm %s0, %s193
          %s195 = sshll.u32 %s194, 4
          %s196 = int_to_ptr.hbm [resolvable:$true] %s195
          %s197 = sshll.u32 %s188, 4
          %s198 = int_to_ptr.vmem [resolvable:$true] %s197
          %203 = dma.hbm_to_vmem [thread:$0]  %s196, 256, %s198, %s185, 128, 128, 8
        $region28: #{tpu_custom_call.1} parent=23 // pred_fallthru
          _
      $region24: #{tpu_custom_call.1} parent=5 // pred_fallthru
        _
      %p204 = scmp.le.s32.totalorder 1, %s16
      %p205 = scmp.lt.s32.totalorder %s16, 3
      %p206 = pnand %p204, %p205
      %p207 = pneg %p206
      // Predicated region
      $region29: #{tpu_custom_call.1} parent=5 // pred_check
        _
      $region30: #{tpu_custom_call.1} parent=5 // pred_check_branch
        %209 = sbr.rel (%p206) target = $region32
      $region31: #{tpu_custom_call.1} parent=5 // pred_region
        %s210 = ssub.s32 %s16, 1
        %s211 = sand.u32 %s43, 1
        %s212 = scalar_lea.sflag [#allocation3], %s211
        %s213 = sand.u32 %s43, 1
        %s214 = smul.addr %s213, 16
        %s215 = scalar_lea.vmem [#allocation2], %s214
        // Predicated region
        $region33: #{tpu_custom_call.1} parent=31 // pred_check
          %p216 = pneg %p56
        $region34: #{tpu_custom_call.1} parent=31 // pred_check_branch
          %218 = sbr.rel (%p216) target = $region36
        $region35: #{tpu_custom_call.1} parent=31 // pred_region
          %220 = dma.done %s212, 256
        $region36: #{tpu_custom_call.1} parent=31 // pred_fallthru
          _
        // Predicated region
        $region37: #{tpu_custom_call.1} parent=31 // pred_check
          %p221 = pneg %p77
        $region38: #{tpu_custom_call.1} parent=31 // pred_check_branch
          %223 = sbr.rel (%p221) target = $region40
        $region39: #{tpu_custom_call.1} parent=31 // pred_region
          %225 = dma.done [#allocation6], 256
        $region40: #{tpu_custom_call.1} parent=31 // pred_fallthru
          _
        // Predicated region
        $region41: #{tpu_custom_call.1} parent=31 // pred_check
          %p226 = pneg %p103
        $region42: #{tpu_custom_call.1} parent=31 // pred_check_branch
          %228 = sbr.rel (%p226) target = $region44
        $region43: #{tpu_custom_call.1} parent=31 // pred_region
          %230 = dma.done [#allocation6], 1024
        $region44: #{tpu_custom_call.1} parent=31 // pred_fallthru
          _
        %s231 = sand.u32 %s43, 1
        %s232 = scalar_lea.sflag [#allocation3], %s231
        %s233 = sand.u32 %s43, 1
        %s234 = smul.addr %s233, 16
        %s235 = scalar_lea.vmem [#allocation2], %s234
        %p236 = pneg %p56
        %p237 = pneg %p53
        %p238 = pneg %p77
        %p239 = pneg %p74
        %p240 = pneg %p103
        %p241 = pneg %p100
        %p242 = pneg %p131
        %p243 = pneg %p128
        %s244 = sand.u32 %s118, 1
        %s245 = scalar_lea.sflag [#allocation4], %s244
        %s246 = sand.u32 %s118, 1
        %s247 = smul.addr %s246, 64
        %s248 = scalar_lea.vmem [#allocation8], %s247
        %s249 = smul.u32 8, %s26
        %s250 = smul.u32 8, %s26
        %v251 = vld [vmem:[%s215] sm:$0xff]
        %v252 = vld [vmem:[%s215 + $0x8] sm:$0xff]
        %v253 = vld [vmem:[#allocation5] sm:$0xff]
        %v254 = vld [vmem:[#allocation5 + $0x8] sm:$0xff]
        %v255 = vld [vmem:[#allocation7] sm:$0xff]
        %v256 = vld [vmem:[#allocation7 + $0x8] sm:$0xff]
        %v257 = vld [vmem:[#allocation7 + $0x10] sm:$0xff]
        %v258 = vld [vmem:[#allocation7 + $0x18] sm:$0xff]
        %v259 = vld [vmem:[#allocation7 + $0x20] sm:$0xff]
        %v260 = vld [vmem:[#allocation7 + $0x28] sm:$0xff]
        %v261 = vld [vmem:[#allocation7 + $0x30] sm:$0xff]
        %v262 = vld [vmem:[#allocation7 + $0x38] sm:$0xff]
        %263 = vxpose.xlu0.b32.start [1/16] %v251, 128
        %264 = vxpose.xlu0.b32.cont [2/16] %v252, 128
        %265 = vxpose.xlu0.b32.cont [3/16] 0.0, 128
        %266 = vxpose.xlu0.b32.cont [4/16] 0.0, 128
        %267 = vxpose.xlu0.b32.cont [5/16] 0.0, 128
        %268 = vxpose.xlu0.b32.cont [6/16] 0.0, 128
        %269 = vxpose.xlu0.b32.cont [7/16] 0.0, 128
        %270 = vxpose.xlu0.b32.cont [8/16] 0.0, 128
        %271 = vxpose.xlu0.b32.cont [9/16] 0.0, 128
        %272 = vxpose.xlu0.b32.cont [10/16] 0.0, 128
        %273 = vxpose.xlu0.b32.cont [11/16] 0.0, 128
        %274 = vxpose.xlu0.b32.cont [12/16] 0.0, 128
        %275 = vxpose.xlu0.b32.cont [13/16] 0.0, 128
        %276 = vxpose.xlu0.b32.cont [14/16] 0.0, 128
        %277 = vxpose.xlu0.b32.cont [15/16] 0.0, 128
        %278 = vxpose.xlu0.b32.end [16/16] 0.0, 128
        %v279 = vpop.trf.xlu0
        %v280 = vpop.trf.xlu0
        %v281 = vpop.trf.xlu0
        %v282 = vpop.trf.xlu0
        %v283 = vpop.trf.xlu0
        %v284 = vpop.trf.xlu0
        %v285 = vpop.trf.xlu0
        %v286 = vpop.trf.xlu0
        %v287 = vpop.trf.xlu0
        %v288 = vpop.trf.xlu0
        %v289 = vpop.trf.xlu0
        %v290 = vpop.trf.xlu0
        %v291 = vpop.trf.xlu0
        %v292 = vpop.trf.xlu0
        %v293 = vpop.trf.xlu0
        %v294 = vpop.trf.xlu0
        %vm295 = vcmask 130048
        %v297 = vsel %vm295, %v279, 0
        %v300 = vsel %vm295, %v280, 0
        %v303 = vsel %vm295, %v281, 0
        %v306 = vsel %vm295, %v282, 0
        %v309 = vsel %vm295, %v283, 0
        %v312 = vsel %vm295, %v284, 0
        %v315 = vsel %vm295, %v285, 0
        %v318 = vsel %vm295, %v286, 0
        %320 = vmatpush.msra.mxu0 0.0
        %321 = vmatpush.msra.mxu0 0.0
        %322 = vmatpush.msra.mxu0 0.0
        %323 = vmatpush.msra.mxu0 0.0
        %324 = vmatpush.msra.mxu0 0.0
        %325 = vmatpush.msra.mxu0 0.0
        %326 = vmatpush.msra.mxu0 0.0
        %327 = vmatpush.msra.mxu0 0.0
        %328 = vmatpush.msra.mxu0 0.0
        %329 = vmatpush.msra.mxu0 0.0
        %330 = vmatpush.msra.mxu0 0.0
        %331 = vmatpush.msra.mxu0 0.0
        %332 = vmatpush.msra.mxu0 0.0
        %333 = vmatpush.msra.mxu0 0.0
        %334 = vmatpush.msra.mxu0 %v254
        %335 = vmatpush.msra.mxu0 %v253
        %336 = vmatmul.f32.gmra.mxu0 %v297
        %v337 = vpop.f32.mrf.mxu0
        %v338 = vadd.f32 %v255, %v337
        %339 = vmatmul.f32.gmra.mxu0 %v300
        %v340 = vpop.f32.mrf.mxu0
        %v341 = vadd.f32 %v256, %v340
        %342 = vmatmul.f32.gmra.mxu0 %v303
        %v343 = vpop.f32.mrf.mxu0
        %v344 = vadd.f32 %v257, %v343
        %345 = vmatmul.f32.gmra.mxu0 %v306
        %v346 = vpop.f32.mrf.mxu0
        %v347 = vadd.f32 %v258, %v346
        %348 = vmatmul.f32.gmra.mxu0 %v309
        %v349 = vpop.f32.mrf.mxu0
        %v350 = vadd.f32 %v259, %v349
        %351 = vmatmul.f32.gmra.mxu0 %v312
        %v352 = vpop.f32.mrf.mxu0
        %v353 = vadd.f32 %v260, %v352
        %354 = vmatmul.f32.gmra.mxu0 %v315
        %v355 = vpop.f32.mrf.mxu0
        %v356 = vadd.f32 %v261, %v355
        %357 = vmatmul.f32.gmra.mxu0 %v318
        %v358 = vpop.f32.mrf.mxu0
        %v359 = vadd.f32 %v262, %v358
        %360 = vdwg.mxu0
        %vm361 = vcmask 539648
        %362 = vst.msk [vmem:[%s248] sm:$0xff] %vm361, %v338
        %363 = vst.msk [vmem:[%s248 + $0x8] sm:$0xff] %vm361, %v341
        %364 = vst.msk [vmem:[%s248 + $0x10] sm:$0xff] %vm361, %v344
        %365 = vst.msk [vmem:[%s248 + $0x18] sm:$0xff] %vm361, %v347
        %366 = vst.msk [vmem:[%s248 + $0x20] sm:$0xff] %vm361, %v350
        %367 = vst.msk [vmem:[%s248 + $0x28] sm:$0xff] %vm361, %v353
        %368 = vst.msk [vmem:[%s248 + $0x30] sm:$0xff] %vm361, %v356
        %369 = vst.msk [vmem:[%s248 + $0x38] sm:$0xff] %vm361, %v359
        %s370 = sand.u32 %s118, 1
        %s371 = scalar_lea.sflag [#allocation4], %s370
        %s372 = sand.u32 %s118, 1
        %s373 = smul.addr %s372, 64
        %s374 = scalar_lea.vmem [#allocation8], %s373
        // Predicated region
        $region45: #{tpu_custom_call.1} parent=31 // pred_check
          %p375 = pneg %p128
        $region46: #{tpu_custom_call.1} parent=31 // pred_check_branch
          %377 = sbr.rel (%p375) target = $region48
        $region47: #{tpu_custom_call.1} parent=31 // pred_region
          %s378 = smul.u32 8, %s26
          %380 = vsyncadd %s371, 0
          %s381 = smul.addr %s25, 8
          %s382 = sadd.s32 %s378, %s381
          %s383 = smul.addr %s382, 8
          %s384 = scalar_lea.hbm %s3, %s383
          %s385 = sshll.u32 %s374, 4
          %s386 = int_to_ptr.vmem [resolvable:$true] %s385
          %s387 = sshll.u32 %s384, 4
          %s388 = int_to_ptr.hbm [resolvable:$true] %s387
          %393 = dma.vmem_to_hbm [thread:$0]  %s386, 1024, %s388, %s371, 128, 128, 8
        $region48: #{tpu_custom_call.1} parent=31 // pred_fallthru
          _
      $region32: #{tpu_custom_call.1} parent=5 // pred_fallthru
        _
      %p394 = scmp.le.s32.totalorder 2, %s16
      // Predicated region
      $region49: #{tpu_custom_call.1} parent=5 // pred_check
        %p395 = pneg %p394
      $region50: #{tpu_custom_call.1} parent=5 // pred_check_branch
        %397 = sbr.rel (%p395) target = $region52
      $region51: #{tpu_custom_call.1} parent=5 // pred_region
        %s398 = ssub.s32 %s16, 2
        // Predicated region
        $region53: #{tpu_custom_call.1} parent=51 // pred_check
          %p399 = pneg %p134
        $region54: #{tpu_custom_call.1} parent=51 // pred_check_branch
          %401 = sbr.rel (%p399) target = $region56
        $region55: #{tpu_custom_call.1} parent=51 // pred_region
          %s402 = sand.u32 %s119, 1
          %s403 = scalar_lea.sflag [#allocation4], %s402
          %s404 = sand.u32 %s119, 1
          %s405 = smul.addr %s404, 64
          %s406 = scalar_lea.vmem [#allocation8], %s405
          %408 = dma.done %s403, 1024
        $region56: #{tpu_custom_call.1} parent=51 // pred_fallthru
          _
      $region52: #{tpu_custom_call.1} parent=5 // pred_fallthru
        _
    $region6: #{tpu_custom_call.1} parent=1 // loop_footer
      %s20 = sadd.s32 1, %s16
    $region7: #{tpu_custom_call.1} parent=1 // loop_footer_branch
      %15 = sbr.rel target = $region3
    $region8: #{tpu_custom_call.1} parent=1 // loop_exit
      _
    %409 = vsyncpa [#allocation3], 1
    %s410 = scalar_lea.sflag [#allocation3], 1
    %411 = vsyncpa %s410, 1
    %412 = vsyncpa [#allocation6], 1
    %413 = vsyncpa [#allocation4], 1
    %s414 = scalar_lea.sflag [#allocation4], 1
    %415 = vsyncpa %s414, 1

</llo_original>
